<compile_context>
chip_gen: v7x
topology: tpu7x:2x2x1
jax: 0.10.0
libtpu: 0.0.40
codegen_flags: <defaults>
</compile_context>

<pallas_src>
import jax
import jax.numpy as jnp
from jax.experimental import pallas as pl
from jax.experimental.pallas import tpu as pltpu

BN_EPS = 1e-5
H1_PAD = 256   # 200 padded to lane multiple
H2_PAD = 128   # 80 padded to lane multiple


def _round_up(n, m):
    return ((n + m - 1) // m) * m


def top_fc_kernel(x_ref, w1_ref, b1_ref, w2_ref, b2_ref, w34_ref, b34_ref,
                  out_ref):
    # dnn1 (BN already folded into w1/b1) + relu   [MXU]
    h1 = jnp.dot(x_ref[...], w1_ref[...], preferred_element_type=jnp.float32)
    h1 = jnp.maximum(h1 + b1_ref[...], 0.0)

    # dnn2 + relu   [MXU]
    h2 = jnp.dot(h1, w2_ref[...], preferred_element_type=jnp.float32)
    h2 = jnp.maximum(h2 + b2_ref[...], 0.0)

    # fused dnn3 @ logits: N=1, so VPU multiply + lane reduction (XLU slot)
    out = jnp.sum(h2 * w34_ref[...], axis=-1, keepdims=True) + b34_ref[...]
    out_ref[...] = out.astype(out_ref.dtype)


def top_fc_layer(x, params, *, tile_b=None, matmul_dtype=jnp.float32):
    """x: [B, input_size] float32 -> logits [B, 1] float32."""
    gamma, beta, w1, b1, w2, b2, w3, b3, w4, b4 = params
    B, F = x.shape
    x = x.astype(jnp.float32)

    # ---- hoisted BatchNorm statistics (training mode, biased variance) ----
    # Single fused pass over x: E[x] and E[x^2] reduce the same operand, so
    # XLA emits one multi-output column reduction.
    mean = jnp.mean(x, axis=0, keepdims=True)                 # [1, F]
    ex2 = jnp.mean(x * x, axis=0, keepdims=True)              # [1, F]
    var = jnp.maximum(ex2 - mean * mean, 0.0)                 # biased variance
    s = gamma * jax.lax.rsqrt(var + BN_EPS)                   # [1, F]
    t = beta - mean * s                                       # [1, F]

    # ---- fold BN into dnn1, pad hidden dims to lane multiples ----
    w1_eff = jnp.zeros((F, H1_PAD), jnp.float32).at[:, :200].set(
        w1 * s.reshape(F, 1))
    b1_eff = jnp.zeros((1, H1_PAD), jnp.float32).at[:, :200].set(t @ w1 + b1)
    w2_p = jnp.zeros((H1_PAD, H2_PAD), jnp.float32).at[:200, :80].set(w2)
    b2_p = jnp.zeros((1, H2_PAD), jnp.float32).at[:, :80].set(b2)

    # ---- fuse dnn3 (80->2) and logits (2->1) into one [80,1] projection ----
    w34 = w3 @ w4                                             # [80, 1]
    w34_row = jnp.zeros((1, H2_PAD), jnp.float32).at[:, :80].set(
        w34.reshape(1, 80))
    b34 = b3 @ w4 + b4                                        # [1, 1]

    # ---- batch tiling: biggest tile that fits the scoped VMEM budget ----
    if tile_b is None:
        budget = 20 * 1024 * 1024
        # resident weights / biases are double-buffered by the pipeline
        weight_bytes = 2 * 4 * (F * H1_PAD + H1_PAD
                                + H1_PAD * H2_PAD + H2_PAD + H2_PAD + 1)
        # per-row: x double-buffer + h1 + h2 intermediates + out
        bytes_per_row = (2 * F + H1_PAD + H2_PAD + 1) * 4
        tile_b = (budget - weight_bytes) // max(bytes_per_row, 1)
        tile_b = max(8, min(2048, (tile_b // 8) * 8))
    tile_b = max(8, _round_up(min(tile_b, _round_up(B, 8)), 8))
    b_pad = _round_up(B, tile_b)
    if b_pad != B:
        x = jnp.concatenate(
            [x, jnp.zeros((b_pad - B, F), jnp.float32)], axis=0)

    if matmul_dtype != jnp.float32:
        # bf16 operands for the dominant first matmul (f32 accumulation)
        x = x.astype(matmul_dtype)
        w1_eff = w1_eff.astype(matmul_dtype)

    grid = (b_pad // tile_b,)
    full = lambda i: (0, 0)

    flops = 2 * b_pad * (F * H1_PAD + H1_PAD * H2_PAD + H2_PAD)
    bytes_accessed = (
        b_pad * F * x.dtype.itemsize + b_pad * 4
        + (F * H1_PAD) * w1_eff.dtype.itemsize
        + (H1_PAD + H1_PAD * H2_PAD + H2_PAD + H2_PAD + 1) * 4)

    out = pl.pallas_call(
        top_fc_kernel,
        out_shape=jax.ShapeDtypeStruct((b_pad, 1), jnp.float32),
        grid=grid,
        in_specs=[
            pl.BlockSpec((tile_b, F), lambda i: (i, 0)),     # x (tiled)
            pl.BlockSpec((F, H1_PAD), full),                 # w1 (resident)
            pl.BlockSpec((1, H1_PAD), full),                 # b1
            pl.BlockSpec((H1_PAD, H2_PAD), full),            # w2
            pl.BlockSpec((1, H2_PAD), full),                 # b2
            pl.BlockSpec((1, H2_PAD), full),                 # fused w3@w4 row
            pl.BlockSpec((1, 1), full),                      # fused bias
        ],
        out_specs=pl.BlockSpec((tile_b, 1), lambda i: (i, 0)),
        compiler_params=pltpu.CompilerParams(
            dimension_semantics=("parallel",),
            vmem_limit_bytes=32 * 1024 * 1024,
        ),
        cost_estimate=pl.CostEstimate(
            flops=flops, transcendentals=0, bytes_accessed=bytes_accessed),
    )(x, w1_eff, b1_eff, w2_p, b2_p, w34_row, b34)

    return out[:B]


def init_params(key, input_size):
    """Deterministic synthetic init mimicking torch shapes.

    Linear weights stored as [in, out] (transposed vs. torch's [out, in]).
    """
    dims = [(input_size, 200), (200, 80), (80, 2), (2, 1)]
    params = [jnp.ones((1, input_size), jnp.float32),    # BN gamma
              jnp.zeros((1, input_size), jnp.float32)]   # BN beta
    for fan_in, fan_out in dims:
        kw, kb, key = jax.random.split(key, 3)
        bound = 1.0 / (fan_in ** 0.5)
        params.append(jax.random.uniform(kw, (fan_in, fan_out), jnp.float32,
                                         -bound, bound))
        params.append(jax.random.uniform(kb, (1, fan_out), jnp.float32,
                                         -bound, bound))
    return tuple(params)


def reference(x, params):
    """Unfused f32 reference matching the torch forward (BN training mode)."""
    gamma, beta, w1, b1, w2, b2, w3, b3, w4, b4 = params
    mean = jnp.mean(x, axis=0, keepdims=True)
    var = jnp.mean((x - mean) ** 2, axis=0, keepdims=True)
    bn = (x - mean) / jnp.sqrt(var + BN_EPS) * gamma + beta
    h1 = jax.nn.relu(bn @ w1 + b1)
    h2 = jax.nn.relu(h1 @ w2 + b2)
    h3 = h2 @ w3 + b3
    return h3 @ w4 + b4


if __name__ == "__main__":
    key = jax.random.PRNGKey(0)
    kx, kp = jax.random.split(key)

    # Small shapes; batch=19 with tile_b=8 exercises a 3-step grid + ragged
    # batch padding.
    batch, input_size = 19, 32
    x = jax.random.normal(kx, (batch, input_size), jnp.float32)
    params = init_params(kp, input_size)

    out = top_fc_layer(x, params, tile_b=8)
    out = jax.block_until_ready(out)

    ref = reference(x, params)
    assert out.shape == (batch, 1), out.shape
    assert jnp.allclose(out, ref, atol=1e-4, rtol=1e-4), (out, ref)

    # Default (auto) tile path as well.
    out2 = jax.block_until_ready(top_fc_layer(x, params))
    assert jnp.allclose(out2, ref, atol=1e-4, rtol=1e-4)

    print("KERNEL_OK")
</pallas_src>

<mosaic_0001>
module attributes {stable_mosaic.version = 11 : i64} {
  func.func @top_fc_kernel(%arg0: i32, %arg1: memref<8x32xf32, #tpu.memory_space<vmem>>, %arg2: memref<32x256xf32, #tpu.memory_space<vmem>>, %arg3: memref<1x256xf32, #tpu.memory_space<vmem>>, %arg4: memref<256x128xf32, #tpu.memory_space<vmem>>, %arg5: memref<1x128xf32, #tpu.memory_space<vmem>>, %arg6: memref<1x128xf32, #tpu.memory_space<vmem>>, %arg7: memref<1x1xf32, #tpu.memory_space<vmem>>, %arg8: memref<8x1xf32, #tpu.memory_space<vmem>>) attributes {dimension_semantics = [#tpu.dimension_semantics<parallel>], iteration_bounds = array<i64: 3>, scalar_prefetch = 0 : i64, scratch_operands = 0 : i64, tpu.core_type = #tpu.core_type<tc>, window_params = [{transform_indices = @transform_0, window_bounds = array<i64: 8, 32>}, {pipeline_mode = #tpu.pipeline_mode<synchronous>, transform_indices = @transform_1, window_bounds = array<i64: 32, 256>}, {pipeline_mode = #tpu.pipeline_mode<synchronous>, transform_indices = @transform_2, window_bounds = array<i64: 1, 256>}, {pipeline_mode = #tpu.pipeline_mode<synchronous>, transform_indices = @transform_3, window_bounds = array<i64: 256, 128>}, {pipeline_mode = #tpu.pipeline_mode<synchronous>, transform_indices = @transform_4, window_bounds = array<i64: 1, 128>}, {pipeline_mode = #tpu.pipeline_mode<synchronous>, transform_indices = @transform_5, window_bounds = array<i64: 1, 128>}, {pipeline_mode = #tpu.pipeline_mode<synchronous>, transform_indices = @transform_6, window_bounds = array<i64: 1, 1>}, {transform_indices = @transform_7, window_bounds = array<i64: 8, 1>}]} {
    %c0 = arith.constant 0 : index
    %c0_0 = arith.constant 0 : index
    %0 = vector.load %arg1[%c0, %c0_0] : memref<8x32xf32, #tpu.memory_space<vmem>>, vector<8x32xf32>
    %c0_1 = arith.constant 0 : index
    %c0_2 = arith.constant 0 : index
    %1 = vector.load %arg2[%c0_1, %c0_2] : memref<32x256xf32, #tpu.memory_space<vmem>>, vector<32x256xf32>
    %cst = arith.constant dense<0.000000e+00> : vector<8x256xf32>
    %2 = tpu.matmul %0, %1, %cst {dimension_numbers = #tpu.dot_dimension_numbers<[1], [0], [0], [1], [0, 0, 1, 1], [], []>} : vector<8x32xf32>, vector<32x256xf32>, vector<8x256xf32> -> vector<8x256xf32>
    %c0_3 = arith.constant 0 : index
    %c0_4 = arith.constant 0 : index
    %3 = vector.load %arg3[%c0_3, %c0_4] : memref<1x256xf32, #tpu.memory_space<vmem>>, vector<1x256xf32>
    %4 = vector.broadcast %3 : vector<1x256xf32> to vector<8x256xf32>
    %5 = arith.addf %2, %4 : vector<8x256xf32>
    %cst_5 = arith.constant 0.000000e+00 : f32
    %6 = vector.broadcast %cst_5 : f32 to vector<8x256xf32>
    %7 = arith.maximumf %5, %6 : vector<8x256xf32>
    %c0_6 = arith.constant 0 : index
    %c0_7 = arith.constant 0 : index
    %8 = vector.load %arg4[%c0_6, %c0_7] : memref<256x128xf32, #tpu.memory_space<vmem>>, vector<256x128xf32>
    %cst_8 = arith.constant dense<0.000000e+00> : vector<8x128xf32>
    %9 = tpu.matmul %7, %8, %cst_8 {dimension_numbers = #tpu.dot_dimension_numbers<[1], [0], [0], [1], [0, 0, 1, 1], [], []>} : vector<8x256xf32>, vector<256x128xf32>, vector<8x128xf32> -> vector<8x128xf32>
    %c0_9 = arith.constant 0 : index
    %c0_10 = arith.constant 0 : index
    %10 = vector.load %arg5[%c0_9, %c0_10] : memref<1x128xf32, #tpu.memory_space<vmem>>, vector<1x128xf32>
    %11 = vector.broadcast %10 : vector<1x128xf32> to vector<8x128xf32>
    %12 = arith.addf %9, %11 : vector<8x128xf32>
    %cst_11 = arith.constant 0.000000e+00 : f32
    %13 = vector.broadcast %cst_11 : f32 to vector<8x128xf32>
    %14 = arith.maximumf %12, %13 : vector<8x128xf32>
    %c0_12 = arith.constant 0 : index
    %c0_13 = arith.constant 0 : index
    %15 = vector.load %arg6[%c0_12, %c0_13] : memref<1x128xf32, #tpu.memory_space<vmem>>, vector<1x128xf32>
    %16 = vector.broadcast %15 : vector<1x128xf32> to vector<8x128xf32>
    %17 = arith.mulf %14, %16 : vector<8x128xf32>
    %cst_14 = arith.constant dense<0.000000e+00> : vector<8xf32>
    %18 = vector.multi_reduction <add>, %17, %cst_14 [1] : vector<8x128xf32> to vector<8xf32>
    %19 = vector.shape_cast %18 : vector<8xf32> to vector<8x1xf32>
    %c0_15 = arith.constant 0 : index
    %c0_16 = arith.constant 0 : index
    %20 = vector.load %arg7[%c0_15, %c0_16] : memref<1x1xf32, #tpu.memory_space<vmem>>, vector<1x1xf32>
    %21 = vector.broadcast %20 : vector<1x1xf32> to vector<8x1xf32>
    %22 = arith.addf %19, %21 : vector<8x1xf32>
    %c0_17 = arith.constant 0 : index
    %c0_18 = arith.constant 0 : index
    %23 = vector.load %arg8[%c0_17, %c0_18] : memref<8x1xf32, #tpu.memory_space<vmem>>, vector<8x1xf32>
    tpu.vector_store %arg8[%c0_17, %c0_18], %22 {strides = array<i32>} : memref<8x1xf32, #tpu.memory_space<vmem>>, vector<8x1xf32>,
    return
  }
  func.func @transform_0(%arg0: i32) -> (i32, i32) {
    %c0_i32 = arith.constant 0 : i32
    %c0_i32_0 = arith.constant 0 : i32
    return %arg0, %c0_i32 : i32, i32
  }
  func.func @transform_1(%arg0: i32) -> (i32, i32) {
    %c0_i32 = arith.constant 0 : i32
    %c0_i32_0 = arith.constant 0 : i32
    %c0_i32_1 = arith.constant 0 : i32
    return %c0_i32, %c0_i32_0 : i32, i32
  }
  func.func @transform_2(%arg0: i32) -> (i32, i32) {
    %c0_i32 = arith.constant 0 : i32
    %c0_i32_0 = arith.constant 0 : i32
    %c0_i32_1 = arith.constant 0 : i32
    return %c0_i32, %c0_i32_0 : i32, i32
  }
  func.func @transform_3(%arg0: i32) -> (i32, i32) {
    %c0_i32 = arith.constant 0 : i32
    %c0_i32_0 = arith.constant 0 : i32
    %c0_i32_1 = arith.constant 0 : i32
    return %c0_i32, %c0_i32_0 : i32, i32
  }
  func.func @transform_4(%arg0: i32) -> (i32, i32) {
    %c0_i32 = arith.constant 0 : i32
    %c0_i32_0 = arith.constant 0 : i32
    %c0_i32_1 = arith.constant 0 : i32
    return %c0_i32, %c0_i32_0 : i32, i32
  }
  func.func @transform_5(%arg0: i32) -> (i32, i32) {
    %c0_i32 = arith.constant 0 : i32
    %c0_i32_0 = arith.constant 0 : i32
    %c0_i32_1 = arith.constant 0 : i32
    return %c0_i32, %c0_i32_0 : i32, i32
  }
  func.func @transform_6(%arg0: i32) -> (i32, i32) {
    %c0_i32 = arith.constant 0 : i32
    %c0_i32_0 = arith.constant 0 : i32
    %c0_i32_1 = arith.constant 0 : i32
    return %c0_i32, %c0_i32_0 : i32, i32
  }
  func.func @transform_7(%arg0: i32) -> (i32, i32) {
    %c0_i32 = arith.constant 0 : i32
    %c0_i32_0 = arith.constant 0 : i32
    return %arg0, %c0_i32 : i32, i32
  }
}

</mosaic_0001>

<llo_original>
// kernel: tpu_custom_call.1
$region0: #{tpu_custom_call.1}
  #allocation0 [shape = 'u32[]', space=smem, size = 0x4, offset = 0x4, fixed_abs, tag = 'smem constant byte address 0x4 - core index']
  #allocation1 [shape = 'u32[144,128]{1,0:T(1,128)}', space=vmem, size = 0x12000, scoped, tag = 'internal scratch']
  #allocation2 [shape = 'f32[1,1]{1,0:T(1,128)S(1)}', space=vmem, size = 0x200, scoped, tag = 'scoped memory for tpu_custom_call.1']
  %s0 = inlined_call_operand.hbm [shape: f32[24,32], index: 0, kind: input, shape index: {}]
  %s1 = inlined_call_operand.hbm [shape: f32[32,256], index: 1, kind: input, shape index: {}]
  %s2 = inlined_call_operand.vmem [shape: f32[1,256], index: 2, kind: input, shape index: {}]
  %s3 = inlined_call_operand.hbm [shape: f32[256,128], index: 3, kind: input, shape index: {}]
  %s4 = inlined_call_operand.vmem [shape: f32[1,128], index: 4, kind: input, shape index: {}]
  %s5 = inlined_call_operand.vmem [shape: f32[1,128], index: 5, kind: input, shape index: {}]
  %s6 = inlined_call_operand.<no memory space> [shape: f32[1,1], index: 6, kind: input, shape index: {}]
  %s7 = inlined_call_operand.vmem [shape: f32[24,1], index: 7, kind: output, shape index: {}]
  %s8 = sld [smem:[#allocation0]]
  $region73: #{tpu_custom_call.1} parent=0
    _
  %s10 = ssub.s32 1, %s8
  %s11 = scalar_select 0, %s10, %s8
  %v12 = vstv %s6
  %13 = vst [vmem:[#allocation2] sm:$0x1] %v12
  $region1: #{tpu_custom_call.1} parent=0
    #allocation3 [shape = 'u8[8192]{0}', space=vmem, size = 0x2000, scoped, tag = 'input window, operand 0']
    #allocation4 [shape = 's32[2]{0}', space=sflag, size = 0x8, scoped, tag = 'scoped memory for tpu_custom_call.1']
    #allocation5 [shape = 'u8[32768]{0}', space=vmem, size = 0x8000, scoped, tag = 'input window, operand 1, single buffered']
    #allocation6 [shape = 's32[1]{0}', space=sflag, size = 0x4, scoped, tag = 'scoped memory for tpu_custom_call.1']
    #allocation7 [shape = 'u8[131072]{0}', space=vmem, size = 0x20000, scoped, tag = 'input window, operand 3, single buffered']
    %14 = vsyncpa [#allocation4], 0
    %s15 = scalar_lea.sflag [#allocation4], 1
    %16 = vsyncpa %s15, 0
    %17 = vsyncpa [#allocation6], 0
    loop: start=0, step=1, limit=5
    $region2: #{tpu_custom_call.1} parent=1 // loop_pre_header
      _
    $region3: #{tpu_custom_call.1} parent=1 // loop_header
      %s19 = sphi 0, %s23
      %p20 = scmp.ge.s32.totalorder %s19, 5
      %s29 = sphi 0, %s31
      %s32 = sphi 0, %s29
      %s33 = sphi 0, %s32
      %s49 = sphi 0, %s33
      %s53 = sphi 0, %s53
      %s55 = sphi 0, %s53
      %s56 = sphi 0, %s55
      %s70 = sphi 0, %s56
      %s74 = sphi 0, %s74
      %s76 = sphi 0, %s74
      %s77 = sphi 0, %s76
      %s91 = sphi 0, %s77
      %s95 = sphi 0, %s95
      %s97 = sphi 0, %s95
      %s98 = sphi 0, %s97
      %s112 = sphi 0, %s98
      %s116 = sphi 0, %s116
      %s118 = sphi 0, %s116
      %s119 = sphi 0, %s118
      %s133 = sphi 0, %s119
      %s137 = sphi 0, %s137
      %s139 = sphi 0, %s137
      %s140 = sphi 0, %s139
      %s154 = sphi 0, %s140
      %s158 = sphi 0, %s158
      %s160 = sphi 0, %s158
      %s161 = sphi 0, %s160
      %s175 = sphi 0, %s161
      %s181 = sphi 0, %s183
      %s184 = sphi 0, %s181
      %s185 = sphi 0, %s184
      %s201 = sphi 0, %s185
    $region4: #{tpu_custom_call.1} parent=1 // loop_header_branch
      %22 = sbr.rel (%p20) target = $region8
    $region5: #{tpu_custom_call.1} parent=1 // loop_body
      %s24 = ssub.s32 %s19, 1
      %s25 = ssub.s32 %s19, 2
      %s26 = sadd.s32 %s19, 1
      %s27 = ssub.s32 %s19, %s26
      %p28 = scmp.eq.s32.totalorder %s27, 0
      %s30 = sadd.s32 %s29, 1
      %s31 = scalar_select %p28, %s29, %s30
      %p34 = pneg %p28
      %p35 = scmp.eq.s32.totalorder %s19, 2
      %p36 = por %p34, %p35
      %p37 = scmp.ne.s32.totalorder %s29, %s32
      %p38 = scmp.eq.s32.totalorder %s19, 0
      %p39 = por %p37, %p38
      %p40 = scmp.ne.s32.totalorder %s29, %s32
      %p41 = scmp.eq.s32.totalorder %s24, 2
      %p42 = por %p40, %p41
      %p43 = scmp.ne.s32.totalorder %s32, %s33
      %p44 = scmp.eq.s32.totalorder %s24, 0
      %p45 = por %p43, %p44
      %p46 = scmp.ne.s32.totalorder %s32, %s33
      %p47 = scmp.eq.s32.totalorder %s25, 2
      %p48 = por %p46, %p47
      %p50 = scmp.ne.s32.totalorder %s33, %s49
      %p51 = scmp.eq.s32.totalorder %s25, 0
      %p52 = por %p50, %p51
      %s54 = sadd.s32 %s53, 1
      %p57 = scmp.eq.s32.totalorder %s19, 2
      %p58 = scmp.ne.s32.totalorder %s53, %s55
      %p59 = scmp.eq.s32.totalorder %s19, 0
      %p60 = por %p58, %p59
      %p61 = scmp.ne.s32.totalorder %s53, %s55
      %p62 = scmp.eq.s32.totalorder %s24, 2
      %p63 = por %p61, %p62
      %p64 = scmp.ne.s32.totalorder %s55, %s56
      %p65 = scmp.eq.s32.totalorder %s24, 0
      %p66 = por %p64, %p65
      %p67 = scmp.ne.s32.totalorder %s55, %s56
      %p68 = scmp.eq.s32.totalorder %s25, 2
      %p69 = por %p67, %p68
      %p71 = scmp.ne.s32.totalorder %s56, %s70
      %p72 = scmp.eq.s32.totalorder %s25, 0
      %p73 = por %p71, %p72
      %s75 = sadd.s32 %s74, 1
      %p78 = scmp.eq.s32.totalorder %s19, 2
      %p79 = scmp.ne.s32.totalorder %s74, %s76
      %p80 = scmp.eq.s32.totalorder %s19, 0
      %p81 = por %p79, %p80
      %p82 = scmp.ne.s32.totalorder %s74, %s76
      %p83 = scmp.eq.s32.totalorder %s24, 2
      %p84 = por %p82, %p83
      %p85 = scmp.ne.s32.totalorder %s76, %s77
      %p86 = scmp.eq.s32.totalorder %s24, 0
      %p87 = por %p85, %p86
      %p88 = scmp.ne.s32.totalorder %s76, %s77
      %p89 = scmp.eq.s32.totalorder %s25, 2
      %p90 = por %p88, %p89
      %p92 = scmp.ne.s32.totalorder %s77, %s91
      %p93 = scmp.eq.s32.totalorder %s25, 0
      %p94 = por %p92, %p93
      %s96 = sadd.s32 %s95, 1
      %p99 = scmp.eq.s32.totalorder %s19, 2
      %p100 = scmp.ne.s32.totalorder %s95, %s97
      %p101 = scmp.eq.s32.totalorder %s19, 0
      %p102 = por %p100, %p101
      %p103 = scmp.ne.s32.totalorder %s95, %s97
      %p104 = scmp.eq.s32.totalorder %s24, 2
      %p105 = por %p103, %p104
      %p106 = scmp.ne.s32.totalorder %s97, %s98
      %p107 = scmp.eq.s32.totalorder %s24, 0
      %p108 = por %p106, %p107
      %p109 = scmp.ne.s32.totalorder %s97, %s98
      %p110 = scmp.eq.s32.totalorder %s25, 2
      %p111 = por %p109, %p110
      %p113 = scmp.ne.s32.totalorder %s98, %s112
      %p114 = scmp.eq.s32.totalorder %s25, 0
      %p115 = por %p113, %p114
      %s117 = sadd.s32 %s116, 1
      %p120 = scmp.eq.s32.totalorder %s19, 2
      %p121 = scmp.ne.s32.totalorder %s116, %s118
      %p122 = scmp.eq.s32.totalorder %s19, 0
      %p123 = por %p121, %p122
      %p124 = scmp.ne.s32.totalorder %s116, %s118
      %p125 = scmp.eq.s32.totalorder %s24, 2
      %p126 = por %p124, %p125
      %p127 = scmp.ne.s32.totalorder %s118, %s119
      %p128 = scmp.eq.s32.totalorder %s24, 0
      %p129 = por %p127, %p128
      %p130 = scmp.ne.s32.totalorder %s118, %s119
      %p131 = scmp.eq.s32.totalorder %s25, 2
      %p132 = por %p130, %p131
      %p134 = scmp.ne.s32.totalorder %s119, %s133
      %p135 = scmp.eq.s32.totalorder %s25, 0
      %p136 = por %p134, %p135
      %s138 = sadd.s32 %s137, 1
      %p141 = scmp.eq.s32.totalorder %s19, 2
      %p142 = scmp.ne.s32.totalorder %s137, %s139
      %p143 = scmp.eq.s32.totalorder %s19, 0
      %p144 = por %p142, %p143
      %p145 = scmp.ne.s32.totalorder %s137, %s139
      %p146 = scmp.eq.s32.totalorder %s24, 2
      %p147 = por %p145, %p146
      %p148 = scmp.ne.s32.totalorder %s139, %s140
      %p149 = scmp.eq.s32.totalorder %s24, 0
      %p150 = por %p148, %p149
      %p151 = scmp.ne.s32.totalorder %s139, %s140
      %p152 = scmp.eq.s32.totalorder %s25, 2
      %p153 = por %p151, %p152
      %p155 = scmp.ne.s32.totalorder %s140, %s154
      %p156 = scmp.eq.s32.totalorder %s25, 0
      %p157 = por %p155, %p156
      %s159 = sadd.s32 %s158, 1
      %p162 = scmp.eq.s32.totalorder %s19, 2
      %p163 = scmp.ne.s32.totalorder %s158, %s160
      %p164 = scmp.eq.s32.totalorder %s19, 0
      %p165 = por %p163, %p164
      %p166 = scmp.ne.s32.totalorder %s158, %s160
      %p167 = scmp.eq.s32.totalorder %s24, 2
      %p168 = por %p166, %p167
      %p169 = scmp.ne.s32.totalorder %s160, %s161
      %p170 = scmp.eq.s32.totalorder %s24, 0
      %p171 = por %p169, %p170
      %p172 = scmp.ne.s32.totalorder %s160, %s161
      %p173 = scmp.eq.s32.totalorder %s25, 2
      %p174 = por %p172, %p173
      %p176 = scmp.ne.s32.totalorder %s161, %s175
      %p177 = scmp.eq.s32.totalorder %s25, 0
      %p178 = por %p176, %p177
      %s179 = ssub.s32 %s19, %s26
      %p180 = scmp.eq.s32.totalorder %s179, 0
      %s182 = sadd.s32 %s181, 1
      %s183 = scalar_select %p180, %s181, %s182
      %p186 = pneg %p180
      %p187 = scmp.eq.s32.totalorder %s19, 2
      %p188 = por %p186, %p187
      %p189 = scmp.ne.s32.totalorder %s181, %s184
      %p190 = scmp.eq.s32.totalorder %s19, 0
      %p191 = por %p189, %p190
      %p192 = scmp.ne.s32.totalorder %s181, %s184
      %p193 = scmp.eq.s32.totalorder %s24, 2
      %p194 = por %p192, %p193
      %p195 = scmp.ne.s32.totalorder %s184, %s185
      %p196 = scmp.eq.s32.totalorder %s24, 0
      %p197 = por %p195, %p196
      %p198 = scmp.ne.s32.totalorder %s184, %s185
      %p199 = scmp.eq.s32.totalorder %s25, 2
      %p200 = por %p198, %p199
      %p202 = scmp.ne.s32.totalorder %s185, %s201
      %p203 = scmp.eq.s32.totalorder %s25, 0
      %p204 = por %p202, %p203
      %p205 = scmp.le.s32.totalorder 1, %s19
      %p206 = scmp.lt.s32.totalorder %s19, 4
      %p207 = pnand %p205, %p206
      %p208 = pneg %p207
      // Predicated region
      $region9: #{tpu_custom_call.1} parent=5 // pred_check
        _
      $region10: #{tpu_custom_call.1} parent=5 // pred_check_branch
        %210 = sbr.rel (%p207) target = $region12
      $region11: #{tpu_custom_call.1} parent=5 // pred_region
        %s211 = ssub.s32 %s19, 1
        // Predicated region
        $region13: #{tpu_custom_call.1} parent=11 // pred_check
          %p212 = pneg %p66
        $region14: #{tpu_custom_call.1} parent=11 // pred_check_branch
          %214 = sbr.rel (%p212) target = $region16
        $region15: #{tpu_custom_call.1} parent=11 // pred_region
          %s216 = ssub.s32 1024, 1024
          %217 = vsyncadd [#allocation6], %s216
          %s218 = sshll.u32 [#allocation5], 4
          %s219 = int_to_ptr.vmem [resolvable:$true] %s218
          %224 = dma.hbm_to_vmem [thread:$0]  %s1, 1024, %s219, [#allocation6], 256, 256, 16
        $region16: #{tpu_custom_call.1} parent=11 // pred_fallthru
          _
        // Predicated region
        $region17: #{tpu_custom_call.1} parent=11 // pred_check
          %p225 = pneg %p87
        $region18: #{tpu_custom_call.1} parent=11 // pred_check_branch
          %227 = sbr.rel (%p225) target = $region20
        $region19: #{tpu_custom_call.1} parent=11 // pred_region
          _
        $region20: #{tpu_custom_call.1} parent=11 // pred_fallthru
          _
        // Predicated region
        $region21: #{tpu_custom_call.1} parent=11 // pred_check
          %p228 = pneg %p108
        $region22: #{tpu_custom_call.1} parent=11 // pred_check_branch
          %230 = sbr.rel (%p228) target = $region24
        $region23: #{tpu_custom_call.1} parent=11 // pred_region
          %s232 = ssub.s32 4096, 4096
          %233 = vsyncadd [#allocation6], %s232
          %s234 = sshll.u32 [#allocation7], 4
          %s235 = int_to_ptr.vmem [resolvable:$true] %s234
          %240 = dma.hbm_to_vmem [thread:$0]  %s3, 4096, %s235, [#allocation6], 128, 128, 8
        $region24: #{tpu_custom_call.1} parent=11 // pred_fallthru
          _
        // Predicated region
        $region25: #{tpu_custom_call.1} parent=11 // pred_check
          %p241 = pneg %p129
        $region26: #{tpu_custom_call.1} parent=11 // pred_check_branch
          %243 = sbr.rel (%p241) target = $region28
        $region27: #{tpu_custom_call.1} parent=11 // pred_region
          _
        $region28: #{tpu_custom_call.1} parent=11 // pred_fallthru
          _
        // Predicated region
        $region29: #{tpu_custom_call.1} parent=11 // pred_check
          %p244 = pneg %p150
        $region30: #{tpu_custom_call.1} parent=11 // pred_check_branch
          %246 = sbr.rel (%p244) target = $region32
        $region31: #{tpu_custom_call.1} parent=11 // pred_region
          _
        $region32: #{tpu_custom_call.1} parent=11 // pred_fallthru
          _
        // Predicated region
        $region33: #{tpu_custom_call.1} parent=11 // pred_check
          %p247 = pneg %p171
        $region34: #{tpu_custom_call.1} parent=11 // pred_check_branch
          %249 = sbr.rel (%p247) target = $region36
        $region35: #{tpu_custom_call.1} parent=11 // pred_region
          _
        $region36: #{tpu_custom_call.1} parent=11 // pred_fallthru
          _
      $region12: #{tpu_custom_call.1} parent=5 // pred_fallthru
        _
      %p250 = scmp.lt.s32.totalorder %s19, 3
      // Predicated region
      $region37: #{tpu_custom_call.1} parent=5 // pred_check
        %p251 = pneg %p250
      $region38: #{tpu_custom_call.1} parent=5 // pred_check_branch
        %253 = sbr.rel (%p251) target = $region40
      $region39: #{tpu_custom_call.1} parent=5 // pred_region
        // Predicated region
        $region41: #{tpu_custom_call.1} parent=39 // pred_check
          %p254 = pneg %p39
        $region42: #{tpu_custom_call.1} parent=39 // pred_check_branch
          %256 = sbr.rel (%p254) target = $region44
        $region43: #{tpu_custom_call.1} parent=39 // pred_region
          %s257 = sand.u32 %s29, 1
          %s258 = scalar_lea.sflag [#allocation4], %s257
          %s259 = sand.u32 %s29, 1
          %s260 = smul.addr %s259, 8
          %s261 = scalar_lea.vmem [#allocation3], %s260
          %s263 = ssub.s32 128, 128
          %264 = vsyncadd %s258, %s263
          %s265 = smul.addr %s19, 128
          %s266 = scalar_lea.hbm %s0, %s265
          %s268 = sshll.u32 %s261, 4
          %s269 = int_to_ptr.vmem [resolvable:$true] %s268
          %271 = dma.hbm_to_vmem [thread:$0]  %s266, 128, %s269, %s258
        $region44: #{tpu_custom_call.1} parent=39 // pred_fallthru
          _
      $region40: #{tpu_custom_call.1} parent=5 // pred_fallthru
        _
      %p272 = scmp.le.s32.totalorder 1, %s19
      %p273 = scmp.lt.s32.totalorder %s19, 4
      %p274 = pnand %p272, %p273
      %p275 = pneg %p274
      // Predicated region
      $region45: #{tpu_custom_call.1} parent=5 // pred_check
        _
      $region46: #{tpu_custom_call.1} parent=5 // pred_check_branch
        %277 = sbr.rel (%p274) target = $region48
      $region47: #{tpu_custom_call.1} parent=5 // pred_region
        %s278 = ssub.s32 %s19, 1
        %s279 = sand.u32 %s32, 1
        %s280 = scalar_lea.sflag [#allocation4], %s279
        %s281 = sand.u32 %s32, 1
        %s282 = smul.addr %s281, 8
        %s283 = scalar_lea.vmem [#allocation3], %s282
        // Predicated region
        $region49: #{tpu_custom_call.1} parent=47 // pred_check
          %p284 = pneg %p45
        $region50: #{tpu_custom_call.1} parent=47 // pred_check_branch
          %286 = sbr.rel (%p284) target = $region52
        $region51: #{tpu_custom_call.1} parent=47 // pred_region
          %287 = dma.done %s280, 128
        $region52: #{tpu_custom_call.1} parent=47 // pred_fallthru
          _
        // Predicated region
        $region53: #{tpu_custom_call.1} parent=47 // pred_check
          %p288 = pneg %p66
        $region54: #{tpu_custom_call.1} parent=47 // pred_check_branch
          %290 = sbr.rel (%p288) target = $region56
        $region55: #{tpu_custom_call.1} parent=47 // pred_region
          %291 = dma.done [#allocation6], 1024
        $region56: #{tpu_custom_call.1} parent=47 // pred_fallthru
          _
        // Predicated region
        $region57: #{tpu_custom_call.1} parent=47 // pred_check
          %p292 = pneg %p108
        $region58: #{tpu_custom_call.1} parent=47 // pred_check_branch
          %294 = sbr.rel (%p292) target = $region60
        $region59: #{tpu_custom_call.1} parent=47 // pred_region
          %295 = dma.done [#allocation6], 4096
        $region60: #{tpu_custom_call.1} parent=47 // pred_fallthru
          _
        %s296 = sand.u32 %s32, 1
        %s297 = scalar_lea.sflag [#allocation4], %s296
        %s298 = sand.u32 %s32, 1
        %s299 = smul.addr %s298, 8
        %s300 = scalar_lea.vmem [#allocation3], %s299
        %p301 = pneg %p45
        %p302 = pneg %p42
        %p303 = pneg %p66
        %p304 = pneg %p63
        %p305 = pneg %p87
        %p306 = pneg %p84
        %p307 = pneg %p108
        %p308 = pneg %p105
        %p309 = pneg %p129
        %p310 = pneg %p126
        %p311 = pneg %p150
        %p312 = pneg %p147
        %p313 = pneg %p171
        %p314 = pneg %p168
        %p315 = pneg %p197
        %p316 = pneg %p194
        %p317 = scmp.lt.s32.totalorder %s24, 2
        %s318 = scalar_select %p317, %s24, 2
        %s319 = smul.addr %s318, 8
        %s320 = scalar_lea.vmem %s7, %s319
        %p321 = scmp.lt.s32.totalorder %s24, 2
        %s322 = scalar_select %p321, %s24, 2
        %s323 = smul.addr %s322, 8
        %s324 = scalar_lea.vmem %s7, %s323
        %v325 = vld [vmem:[%s283] sm:$0xff]
        %v326 = vld [vmem:[#allocation5] sm:$0xff]
        %v327 = vld [vmem:[#allocation5 + $0x8] sm:$0xff]
        %v328 = vld [vmem:[#allocation5 + $0x10] sm:$0xff]
        %v329 = vld [vmem:[#allocation5 + $0x18] sm:$0xff]
        %v330 = vld [vmem:[#allocation5 + $0x20] sm:$0xff]
        %v331 = vld [vmem:[#allocation5 + $0x28] sm:$0xff]
        %v332 = vld [vmem:[#allocation5 + $0x30] sm:$0xff]
        %v333 = vld [vmem:[#allocation5 + $0x38] sm:$0xff]
        %v334 = vld [vmem:[%s2] sm:$0x3]
        %v336 = vlaneseq
        %v337 = vshrl.u32 %v336, 7
        %v338 = vsub.s32 0, %v337
        %v339 = vrot.slane %v334, %v338
        %v340 = vlaneseq
        %v341 = vshrl.u32 %v340, 7
        %v342 = vsub.s32 1, %v341
        %v343 = vrot.slane %v334, %v342
        %vm346 = vcmask 261120
        %v348 = vsel %vm346, %v325, 0
        %350 = vmatprep.subr.mxu0 %v327
        %351 = vmatpush1.msra.mxu0 %v326
        %352 = vmatprep.subr.mxu0 %v329
        %353 = vmatpush1.msra.mxu0 %v328
        %354 = vmatprep.subr.mxu0 %v331
        %355 = vmatpush1.msra.mxu0 %v330
        %356 = vmatprep.subr.mxu0 %v333
        %357 = vmatpush1.msra.mxu0 %v332
        %358 = vmatprep.subr.mxu0 0.0
        %359 = vmatpush1.msra.mxu0 0.0
        %360 = vmatprep.subr.mxu0 0.0
        %361 = vmatpush1.msra.mxu0 0.0
        %362 = vmatprep.subr.mxu0 0.0
        %363 = vmatpush1.msra.mxu0 0.0
        %364 = vmatprep.subr.mxu0 0.0
        %365 = vmatpush1.msra.mxu0 0.0
        %366 = vmatprep.subr.mxu0 0.0
        %367 = vmatpush1.msra.mxu0 0.0
        %368 = vmatprep.subr.mxu0 0.0
        %369 = vmatpush1.msra.mxu0 0.0
        %370 = vmatprep.subr.mxu0 0.0
        %371 = vmatpush1.msra.mxu0 0.0
        %372 = vmatprep.subr.mxu0 0.0
        %373 = vmatpush1.msra.mxu0 0.0
        %374 = vmatprep.subr.mxu0 0.0
        %375 = vmatpush1.msra.mxu0 0.0
        %376 = vmatprep.subr.mxu0 0.0
        %377 = vmatpush1.msra.mxu0 0.0
        %378 = vmatprep.subr.mxu0 0.0
        %379 = vmatpush1.msra.mxu0 0.0
        %380 = vmatprep.subr.mxu0 0.0
        %381 = vmatpush1.msra.mxu0 0.0
        %382 = vmatprep.subr.mxu0 0.0
        %383 = vmatpush1.msra.mxu0 0.0
        %384 = vmatprep.subr.mxu0 0.0
        %385 = vmatpush1.msra.mxu0 0.0
        %386 = vmatprep.subr.mxu0 0.0
        %387 = vmatpush1.msra.mxu0 0.0
        %388 = vmatprep.subr.mxu0 0.0
        %389 = vmatpush1.msra.mxu0 0.0
        %390 = vmatprep.subr.mxu0 0.0
        %391 = vmatpush1.msra.mxu0 0.0
        %392 = vmatprep.subr.mxu0 0.0
        %393 = vmatpush1.msra.mxu0 0.0
        %394 = vmatprep.subr.mxu0 0.0
        %395 = vmatpush1.msra.mxu0 0.0
        %396 = vmatprep.subr.mxu0 0.0
        %397 = vmatpush1.msra.mxu0 0.0
        %398 = vmatprep.subr.mxu0 0.0
        %399 = vmatpush1.msra.mxu0 0.0
        %400 = vmatprep.subr.mxu0 0.0
        %401 = vmatpush1.msra.mxu0 0.0
        %402 = vmatprep.subr.mxu0 0.0
        %403 = vmatpush1.msra.mxu0 0.0
        %404 = vmatprep.subr.mxu0 0.0
        %405 = vmatpush1.msra.mxu0 0.0
        %406 = vmatprep.subr.mxu0 0.0
        %407 = vmatpush1.msra.mxu0 0.0
        %408 = vmatprep.subr.mxu0 0.0
        %409 = vmatpush1.msra.mxu0 0.0
        %410 = vmatprep.subr.mxu0 0.0
        %411 = vmatpush1.msra.mxu0 0.0
        %412 = vmatprep.subr.mxu0 0.0
        %413 = vmatpush1.msra.mxu0 0.0
        %414 = vmatprep.mubr.f32.mxu0 0.0
        %415 = vmatmul.mubr.f32.gmra.mrb[0].mxu0 %v348
        %v416 = vpop.f32.mrb[0].mxu0
        %v417 = vadd.f32 %v339, %v416
        %v418 = vpop.f32.mrb[0].mxu0
        %v419 = vadd.f32 %v343, %v418
        %420 = vdwg.mxu0
        %v421 = vmax.f32 %v417, 0.0
        %v422 = vmax.f32 %v419, 0.0
        %v423 = vld [vmem:[#allocation7] sm:$0xff]
        %v424 = vld [vmem:[#allocation7 + $0x8] sm:$0xff]
        %v425 = vld [vmem:[#allocation7 + $0x10] sm:$0xff]
        %v426 = vld [vmem:[#allocation7 + $0x18] sm:$0xff]
        %v427 = vld [vmem:[#allocation7 + $0x20] sm:$0xff]
        %v428 = vld [vmem:[#allocation7 + $0x28] sm:$0xff]
        %v429 = vld [vmem:[#allocation7 + $0x30] sm:$0xff]
        %v430 = vld [vmem:[#allocation7 + $0x38] sm:$0xff]
        %v431 = vld [vmem:[#allocation7 + $0x40] sm:$0xff]
        %v432 = vld [vmem:[#allocation7 + $0x48] sm:$0xff]
        %v433 = vld [vmem:[#allocation7 + $0x50] sm:$0xff]
        %v434 = vld [vmem:[#allocation7 + $0x58] sm:$0xff]
        %v435 = vld [vmem:[#allocation7 + $0x60] sm:$0xff]
        %v436 = vld [vmem:[#allocation7 + $0x68] sm:$0xff]
        %v437 = vld [vmem:[#allocation7 + $0x70] sm:$0xff]
        %v438 = vld [vmem:[#allocation7 + $0x78] sm:$0xff]
        %v439 = vld [vmem:[#allocation7 + $0x80] sm:$0xff]
        %v440 = vld [vmem:[#allocation7 + $0x88] sm:$0xff]
        %v441 = vld [vmem:[#allocation7 + $0x90] sm:$0xff]
        %v442 = vld [vmem:[#allocation7 + $0x98] sm:$0xff]
        %v443 = vld [vmem:[#allocation7 + $0xa0] sm:$0xff]
        %v444 = vld [vmem:[#allocation7 + $0xa8] sm:$0xff]
        %v445 = vld [vmem:[#allocation7 + $0xb0] sm:$0xff]
        %v446 = vld [vmem:[#allocation7 + $0xb8] sm:$0xff]
        %v447 = vld [vmem:[#allocation7 + $0xc0] sm:$0xff]
        %v448 = vld [vmem:[#allocation7 + $0xc8] sm:$0xff]
        %v449 = vld [vmem:[#allocation7 + $0xd0] sm:$0xff]
        %v450 = vld [vmem:[#allocation7 + $0xd8] sm:$0xff]
        %v451 = vld [vmem:[#allocation7 + $0xe0] sm:$0xff]
        %v452 = vld [vmem:[#allocation7 + $0xe8] sm:$0xff]
        %v453 = vld [vmem:[#allocation7 + $0xf0] sm:$0xff]
        %v454 = vld [vmem:[#allocation7 + $0xf8] sm:$0xff]
        %v455 = vld [vmem:[%s4] sm:$0x1]
        %v457 = vlaneseq
        %v458 = vshrl.u32 %v457, 7
        %v459 = vsub.s32 0, %v458
        %v460 = vrot.slane %v455, %v459
        %462 = vmatprep.subr.mxu0 0.0
        %463 = vmatpush1.msra.mxu0 %v423
        %464 = vmatprep.subr.mxu0 0.0
        %465 = vmatpush1.msra.mxu0 %v424
        %466 = vmatprep.subr.mxu0 0.0
        %467 = vmatpush1.msra.mxu0 %v425
        %468 = vmatprep.subr.mxu0 0.0
        %469 = vmatpush1.msra.mxu0 %v426
        %470 = vmatprep.subr.mxu0 0.0
        %471 = vmatpush1.msra.mxu0 %v427
        %472 = vmatprep.subr.mxu0 0.0
        %473 = vmatpush1.msra.mxu0 %v428
        %474 = vmatprep.subr.mxu0 0.0
        %475 = vmatpush1.msra.mxu0 %v429
        %476 = vmatprep.subr.mxu0 0.0
        %477 = vmatpush1.msra.mxu0 %v430
        %478 = vmatprep.subr.mxu0 0.0
        %479 = vmatpush1.msra.mxu0 %v431
        %480 = vmatprep.subr.mxu0 0.0
        %481 = vmatpush1.msra.mxu0 %v432
        %482 = vmatprep.subr.mxu0 0.0
        %483 = vmatpush1.msra.mxu0 %v433
        %484 = vmatprep.subr.mxu0 0.0
        %485 = vmatpush1.msra.mxu0 %v434
        %486 = vmatprep.subr.mxu0 0.0
        %487 = vmatpush1.msra.mxu0 %v435
        %488 = vmatprep.subr.mxu0 0.0
        %489 = vmatpush1.msra.mxu0 %v436
        %490 = vmatprep.subr.mxu0 0.0
        %491 = vmatpush1.msra.mxu0 %v437
        %492 = vmatprep.subr.mxu0 0.0
        %493 = vmatpush1.msra.mxu0 %v438
        %494 = vmatprep.subr.mxu0 0.0
        %495 = vmatpush1.msra.mxu0 %v439
        %496 = vmatprep.subr.mxu0 0.0
        %497 = vmatpush1.msra.mxu0 %v440
        %498 = vmatprep.subr.mxu0 0.0
        %499 = vmatpush1.msra.mxu0 %v441
        %500 = vmatprep.subr.mxu0 0.0
        %501 = vmatpush1.msra.mxu0 %v442
        %502 = vmatprep.subr.mxu0 0.0
        %503 = vmatpush1.msra.mxu0 %v443
        %504 = vmatprep.subr.mxu0 0.0
        %505 = vmatpush1.msra.mxu0 %v444
        %506 = vmatprep.subr.mxu0 0.0
        %507 = vmatpush1.msra.mxu0 %v445
        %508 = vmatprep.subr.mxu0 0.0
        %509 = vmatpush1.msra.mxu0 %v446
        %510 = vmatprep.subr.mxu0 0.0
        %511 = vmatpush1.msra.mxu0 %v447
        %512 = vmatprep.subr.mxu0 0.0
        %513 = vmatpush1.msra.mxu0 %v448
        %514 = vmatprep.subr.mxu0 0.0
        %515 = vmatpush1.msra.mxu0 %v449
        %516 = vmatprep.subr.mxu0 0.0
        %517 = vmatpush1.msra.mxu0 %v450
        %518 = vmatprep.subr.mxu0 0.0
        %519 = vmatpush1.msra.mxu0 %v451
        %520 = vmatprep.subr.mxu0 0.0
        %521 = vmatpush1.msra.mxu0 %v452
        %522 = vmatprep.subr.mxu0 0.0
        %523 = vmatpush1.msra.mxu0 %v453
        %524 = vmatprep.subr.mxu0 0.0
        %525 = vmatpush1.msra.mxu0 %v454
        %526 = vmatprep.mubr.f32.mxu0 %v422
        %527 = vmatmul.mubr.f32.gmra.mrb[0].mxu0 %v421
        %v528 = vpop.f32.mrb[0].mxu0
        %v529 = vadd.f32 %v460, %v528
        %v530 = vpop.f32.mrb[0].mxu0
        %531 = vdwg.mxu0
        %v532 = vmax.f32 %v529, 0.0
        %v533 = vld [vmem:[%s5] sm:$0x1]
        %v535 = vlaneseq
        %v536 = vshrl.u32 %v535, 7
        %v537 = vsub.s32 0, %v536
        %v538 = vrot.slane %v533, %v537
        %v540 = vmul.f32 %v532, %v538
        %541 = vadd.xlane.f32.xlu0 %v540
        %v542 = vpop.xlane.xlu0 %541
        %v543 = vld [vmem:[#allocation2] sm:$0x1]
        %v545 = vlaneseq
        %v546 = vshrl.u32 %v545, 7
        %v547 = vsub.s32 0, %v546
        %v548 = vrot.slane %v543, %v547
        %v550 = vadd.f32 %v542, %v548
        %vm551 = vcmask 7168
        %552 = vst.msk [vmem:[%s324] sm:$0xff] %vm551, %v550
        %p553 = scmp.lt.s32.totalorder %s24, 2
        %s554 = scalar_select %p553, %s24, 2
        %s555 = smul.addr %s554, 8
        %s556 = scalar_lea.vmem %s7, %s555
        // Predicated region
        $region61: #{tpu_custom_call.1} parent=47 // pred_check
          %p557 = pneg %p194
        $region62: #{tpu_custom_call.1} parent=47 // pred_check_branch
          %559 = sbr.rel (%p557) target = $region64
        $region63: #{tpu_custom_call.1} parent=47 // pred_region
          _
        $region64: #{tpu_custom_call.1} parent=47 // pred_fallthru
          _
      $region48: #{tpu_custom_call.1} parent=5 // pred_fallthru
        _
      %p560 = scmp.le.s32.totalorder 2, %s19
      // Predicated region
      $region65: #{tpu_custom_call.1} parent=5 // pred_check
        %p561 = pneg %p560
      $region66: #{tpu_custom_call.1} parent=5 // pred_check_branch
        %563 = sbr.rel (%p561) target = $region68
      $region67: #{tpu_custom_call.1} parent=5 // pred_region
        %s564 = ssub.s32 %s19, 2
        // Predicated region
        $region69: #{tpu_custom_call.1} parent=67 // pred_check
          %p565 = pneg %p200
        $region70: #{tpu_custom_call.1} parent=67 // pred_check_branch
          %567 = sbr.rel (%p565) target = $region72
        $region71: #{tpu_custom_call.1} parent=67 // pred_region
          %p568 = scmp.lt.s32.totalorder %s25, 2
          %s569 = scalar_select %p568, %s25, 2
          %s570 = smul.addr %s569, 8
          %s571 = scalar_lea.vmem %s7, %s570
        $region72: #{tpu_custom_call.1} parent=67 // pred_fallthru
          _
      $region68: #{tpu_custom_call.1} parent=5 // pred_fallthru
        _
    $region6: #{tpu_custom_call.1} parent=1 // loop_footer
      %s23 = sadd.s32 1, %s19
    $region7: #{tpu_custom_call.1} parent=1 // loop_footer_branch
      %18 = sbr.rel target = $region3
    $region8: #{tpu_custom_call.1} parent=1 // loop_exit
      _
    %572 = vsyncpa [#allocation4], 1
    %s573 = scalar_lea.sflag [#allocation4], 1
    %574 = vsyncpa %s573, 1
    %575 = vsyncpa [#allocation6], 1

</llo_original>
